<compile_context>
chip_gen: v5e
topology: v5e:2x2
jax: 0.10.0
libtpu: 0.0.40
codegen_flags: <defaults>
</compile_context>

<pallas_src>
import functools
import math

import jax
import jax.numpy as jnp
from jax import lax
from jax.experimental import pallas as pl
from jax.experimental.pallas import tpu as pltpu

EPS = 1e-5
ACT_DTYPE = jnp.bfloat16                 # inter-stage activation storage dtype
ACT_BYTES = jnp.dtype(ACT_DTYPE).itemsize
VMEM_LIMIT = 32 * 1024 * 1024            # safe on v5e/v6e/v7x; usage here is << this


# ---------------------------------------------------------------------------
# helpers
# ---------------------------------------------------------------------------
def _pick_row_tile(R, max_rows=1024):
    """Largest divisor of R that is a multiple of 16 (bf16 sublane tile) and
    <= max_rows; a single full-extent block when R is already small."""
    if R <= max_rows:
        return R
    divs = [t for t in range(16, max_rows + 1, 16) if R % t == 0]
    return max(divs) if divs else R


def _block_diag(w, G):
    """(Cin, Cout) -> block-diagonal (G*Cin, G*Cout) so the 1x1x1 conv runs on
    the lane-packed (M/G, G*C) activation view (extra zero FLOPs are free while
    HBM-bandwidth bound)."""
    cin, cout = w.shape
    eye = jnp.eye(G, dtype=w.dtype)
    return jnp.einsum("gh,io->giho", eye, w).reshape(G * cin, G * cout)


# ---------------------------------------------------------------------------
# Stage A / C kernel: [optional bn-apply+ReLU] -> 1x1x1 conv -> bn stats
# ---------------------------------------------------------------------------
def _mm_bn_stats_kernel(x_ref, sc_ref, sh_ref, w_ref, o_ref, s_ref, q_ref, *, pre_act):
    @pl.when(pl.program_id(0) == 0)
    def _():
        s_ref[...] = jnp.zeros_like(s_ref)
        q_ref[...] = jnp.zeros_like(q_ref)

    x = x_ref[...].astype(jnp.float32)           # widen bf16 storage for VPU/MXU
    if pre_act:                                  # fused bn-apply + ReLU of prev stage
        x = jnp.maximum(x * sc_ref[...] + sh_ref[...], 0.0)
    y = jnp.dot(x, w_ref[...], preferred_element_type=jnp.float32)
    o_ref[...] = y.astype(o_ref.dtype)
    s_ref[...] += jnp.sum(y, axis=0, keepdims=True)
    q_ref[...] += jnp.sum(y * y, axis=0, keepdims=True)


def _matmul_bn_stats(x_p, w_bd, scale=None, shift=None):
    """x_p: (R, Kin) packed bf16 activations, w_bd: (Kin, Kout) f32 block-diag
    weight. Returns bf16 conv output (R, Kout) plus f32 per-lane sum / sumsq."""
    R, Kin = x_p.shape
    Kout = w_bd.shape[1]
    pre_act = scale is not None
    if not pre_act:
        scale = jnp.ones((1, Kin), jnp.float32)
        shift = jnp.zeros((1, Kin), jnp.float32)
    TR = _pick_row_tile(R)
    kernel = functools.partial(_mm_bn_stats_kernel, pre_act=pre_act)
    cost = pl.CostEstimate(
        flops=2 * R * Kin * Kout,
        transcendentals=0,
        bytes_accessed=R * Kin * ACT_BYTES + R * Kout * ACT_BYTES + Kin * Kout * 4)
    return pl.pallas_call(
        kernel,
        out_shape=(
            jax.ShapeDtypeStruct((R, Kout), ACT_DTYPE),
            jax.ShapeDtypeStruct((1, Kout), jnp.float32),
            jax.ShapeDtypeStruct((1, Kout), jnp.float32),
        ),
        grid_spec=pltpu.PrefetchScalarGridSpec(
            num_scalar_prefetch=0,
            grid=(R // TR,),
            in_specs=[
                pl.BlockSpec((TR, Kin), lambda i: (i, 0)),
                pl.BlockSpec((1, Kin), lambda i: (0, 0)),
                pl.BlockSpec((1, Kin), lambda i: (0, 0)),
                pl.BlockSpec((Kin, Kout), lambda i: (0, 0)),
            ],
            out_specs=(
                pl.BlockSpec((TR, Kout), lambda i: (i, 0)),
                pl.BlockSpec((1, Kout), lambda i: (0, 0)),
                pl.BlockSpec((1, Kout), lambda i: (0, 0)),
            ),
        ),
        compiler_params=pltpu.CompilerParams(
            dimension_semantics=("arbitrary",),     # stats accumulate across row tiles
            vmem_limit_bytes=VMEM_LIMIT),
        cost_estimate=cost,
    )(x_p, scale, shift, w_bd)


# ---------------------------------------------------------------------------
# Stage B kernel: bn1-apply+ReLU -> 3x3x3 conv (im2col, stride 1, pad 1) -> bn2 stats
# Grid is (N,); the depth loop is unrolled in-kernel with a 3-slot halo ring
# buffer so each depth slice is BN+ReLU'd / padded exactly once.
# ---------------------------------------------------------------------------
def _conv2_kernel(x_ref, sc_ref, sh_ref, w_ref, o_ref, s_ref, q_ref, pad_ref,
                  *, D, H, W, C, G):
    # x_ref  : (D, H, W, C)  bf16 conv1 output for sample n
    # sc/sh  : (1, C)        f32 bn1 scale / shift
    # w_ref  : (27*C, C)     f32 im2col weight, rows ordered (kd, kh, kw, cin)
    # o_ref  : (D*H*W/G, G*C) bf16 packed, lane-dense conv2 output for sample n
    # s/q    : (1, G*C)      f32 bn2 sum / sumsq (packed lanes, accumulated over n)
    # pad_ref: (3, H+2, W+2, C) f32 ring buffer of BN+ReLU'd, zero-padded taps
    n = pl.program_id(0)
    HWg = (H * W) // G

    @pl.when(n == 0)
    def _():
        s_ref[...] = jnp.zeros_like(s_ref)
        q_ref[...] = jnp.zeros_like(q_ref)

    sc = sc_ref[...]                       # (1, C) broadcasts against (H, W, C)
    sh = sh_ref[...]
    zcol = jnp.zeros((H, 1, C), jnp.float32)

    # One-time zeroing per sample: provides the h-borders and the depth -1 tap.
    pad_ref[...] = jnp.zeros_like(pad_ref)

    def fill_slot(slot, s):
        """BN+ReLU depth slice s (zeros if s >= D) into ring slot `slot`."""
        if s < D:
            a = jnp.maximum(x_ref[s].astype(jnp.float32) * sc + sh, 0.0)  # (H, W, C)
        else:
            a = jnp.zeros((H, W, C), jnp.float32)
        ap = jnp.concatenate([zcol, a, zcol], axis=1)                      # (H, W+2, C)
        pad_ref[slot, 1:H + 1, :, :] = ap          # aligned store; h-borders stay 0

    # slot for depth s is (s + 1) % 3; depth -1 is slot 0 (already zero).
    fill_slot(1, 0)

    # TODO(synk): switch to pl.loop with dynamic ring-slot indices for large D.
    for d in range(D):
        fill_slot((d + 2) % 3, d + 1)              # new tap: depth d+1
        # im2col: one (H*W, 27*C) patch -> single MXU matmul per depth slice.
        pieces = []
        for kd in range(3):
            tap = pad_ref[(d + kd) % 3]            # (H+2, W+2, C), depth d-1+kd
            for kh in range(3):
                for kw in range(3):
                    pieces.append(tap[kh:kh + H, kw:kw + W, :])
        patch = jnp.concatenate(pieces, axis=-1).reshape(H * W, 27 * C)
        y = jnp.dot(patch, w_ref[...], preferred_element_type=jnp.float32)  # (H*W, C)
        yp = y.reshape(HWg, G * C)                 # lane-dense packed view
        o_ref[d * HWg:(d + 1) * HWg, :] = yp.astype(o_ref.dtype)
        s_ref[...] += jnp.sum(yp, axis=0, keepdims=True)
        q_ref[...] += jnp.sum(yp * yp, axis=0, keepdims=True)


def _conv2_bn_stats(out1_5d, scale1, shift1, w2col, G):
    N, D, H, W, C = out1_5d.shape
    HWg = (H * W) // G
    kernel = functools.partial(_conv2_kernel, D=D, H=H, W=W, C=C, G=G)
    cost = pl.CostEstimate(
        flops=2 * N * D * H * W * 27 * C * C,
        transcendentals=0,
        bytes_accessed=2 * N * D * H * W * C * ACT_BYTES + 27 * C * C * 4)
    return pl.pallas_call(
        kernel,
        out_shape=(
            jax.ShapeDtypeStruct((N, D * HWg, G * C), ACT_DTYPE),
            jax.ShapeDtypeStruct((1, G * C), jnp.float32),
            jax.ShapeDtypeStruct((1, G * C), jnp.float32),
        ),
        grid_spec=pltpu.PrefetchScalarGridSpec(
            num_scalar_prefetch=0,
            grid=(N,),
            in_specs=[
                pl.BlockSpec((None, D, H, W, C), lambda n: (n, 0, 0, 0, 0)),
                pl.BlockSpec((1, C), lambda n: (0, 0)),
                pl.BlockSpec((1, C), lambda n: (0, 0)),
                pl.BlockSpec((27 * C, C), lambda n: (0, 0)),
            ],
            out_specs=(
                pl.BlockSpec((None, D * HWg, G * C), lambda n: (n, 0, 0)),
                pl.BlockSpec((1, G * C), lambda n: (0, 0)),
                pl.BlockSpec((1, G * C), lambda n: (0, 0)),
            ),
            scratch_shapes=[pltpu.VMEM((3, H + 2, W + 2, C), jnp.float32)],
        ),
        compiler_params=pltpu.CompilerParams(
            dimension_semantics=("arbitrary",),     # bn2 stats accumulate across n
            vmem_limit_bytes=VMEM_LIMIT),
        cost_estimate=cost,
    )(out1_5d, scale1, shift1, w2col)


# ---------------------------------------------------------------------------
# Stage D kernel: bn3-apply + residual add + ReLU (elementwise epilogue)
# ---------------------------------------------------------------------------
def _epilogue_kernel(x_ref, r_ref, sc_ref, sh_ref, o_ref):
    x = x_ref[...].astype(jnp.float32)
    r = r_ref[...].astype(jnp.float32)
    o_ref[...] = jnp.maximum(x * sc_ref[...] + sh_ref[...] + r, 0.0)


def _bn_add_relu(x_p, res_p, scale_t, shift_t):
    R, K = x_p.shape
    TR = _pick_row_tile(R)
    cost = pl.CostEstimate(
        flops=4 * R * K, transcendentals=0,
        bytes_accessed=R * K * (2 * ACT_BYTES + 4))
    return pl.pallas_call(
        _epilogue_kernel,
        out_shape=jax.ShapeDtypeStruct((R, K), jnp.float32),
        grid_spec=pltpu.PrefetchScalarGridSpec(
            num_scalar_prefetch=0,
            grid=(R // TR,),
            in_specs=[
                pl.BlockSpec((TR, K), lambda i: (i, 0)),
                pl.BlockSpec((TR, K), lambda i: (i, 0)),
                pl.BlockSpec((1, K), lambda i: (0, 0)),
                pl.BlockSpec((1, K), lambda i: (0, 0)),
            ],
            out_specs=pl.BlockSpec((TR, K), lambda i: (i, 0)),
        ),
        compiler_params=pltpu.CompilerParams(
            dimension_semantics=("parallel",),
            vmem_limit_bytes=VMEM_LIMIT),
        cost_estimate=cost,
    )(x_p, res_p, scale_t, shift_t)


# ---------------------------------------------------------------------------
# Bottleneck3D forward (stride=1, downsample=None)
# ---------------------------------------------------------------------------
def bottleneck3d_forward(x_ncdhw, params):
    # NCDHW -> NDHWC, fused with the bf16 cast (half the transpose write traffic).
    # TODO(synk): keep the surrounding network NDHWC to drop this copy entirely.
    x = jnp.transpose(x_ncdhw.astype(ACT_DTYPE), (0, 2, 3, 4, 1))  # NDHWC bf16
    N, D, H, W, Cin = x.shape
    Cmid = params["w1"].shape[1]
    Cexp = params["w3"].shape[1]
    assert Cexp == Cin, "identity residual needs in_channels == out_channels*expansion"
    M = N * D * H * W

    # lane-packing: G consecutive spatial positions share one row so the packed
    # channel dim (G*C) fills the 128-wide lane dimension.
    G = 128 // math.gcd(128, Cmid)
    if (M % G) or ((H * W) % G) or ((H * W // G) % 8):
        G = 1  # TODO(synk): lane-sparse fallback; correct but a large perf cliff.
    R = M // G

    x_p = x.reshape(R, G * Cin)

    w1bd = _block_diag(params["w1"], G)            # (G*Cin,  G*Cmid)
    w3bd = _block_diag(params["w3"], G)            # (G*Cmid, G*Cexp)
    w2col = params["w2"].reshape(27 * Cmid, Cmid)  # rows ordered (kd, kh, kw, cin)

    def bn_affine(s_lane, q_lane, gamma, beta, n_ch):
        # fold packed-lane partials (groups of n_ch channels) into per-channel stats
        s = s_lane.reshape(-1, n_ch).sum(axis=0)
        q = q_lane.reshape(-1, n_ch).sum(axis=0)
        mean = s / M
        var = jnp.maximum(q / M - mean * mean, 0.0)
        scale = gamma / jnp.sqrt(var + EPS)
        shift = beta - mean * scale
        return scale.reshape(1, -1), shift.reshape(1, -1)

    # stage A: conv1 (1x1x1) + bn1 stats
    out1_p, s1, q1 = _matmul_bn_stats(x_p, w1bd)
    scale1, shift1 = bn_affine(s1, q1, params["g1"], params["b1"], Cmid)

    # stage B: bn1-apply+relu + conv2 (3x3x3, stride 1, pad 1) + bn2 stats
    out1_5d = out1_p.reshape(N, D, H, W, Cmid)
    out2, s2, q2 = _conv2_bn_stats(out1_5d, scale1, shift1, w2col, G)
    scale2, shift2 = bn_affine(s2, q2, params["g2"], params["b2"], Cmid)

    # stage C: bn2-apply+relu + conv3 (1x1x1 expansion) + bn3 stats
    out2_p = out2.reshape(R, G * Cmid)
    out3_p, s3, q3 = _matmul_bn_stats(
        out2_p, w3bd, jnp.tile(scale2, (1, G)), jnp.tile(shift2, (1, G)))
    scale3, shift3 = bn_affine(s3, q3, params["g3"], params["b3"], Cexp)

    # stage D: bn3-apply + identity residual + relu
    y_p = _bn_add_relu(out3_p, x_p, jnp.tile(scale3, (1, G)), jnp.tile(shift3, (1, G)))

    y = y_p.reshape(N, D, H, W, Cexp)
    return jnp.transpose(y, (0, 4, 1, 2, 3))  # back to NCDHW


# ---------------------------------------------------------------------------
# Pure-JAX f32 reference for verification
# ---------------------------------------------------------------------------
def bottleneck3d_reference(x_ncdhw, params):
    x = jnp.transpose(x_ncdhw, (0, 2, 3, 4, 1)).astype(jnp.float32)

    def bn(v, g, b):
        mean = jnp.mean(v, axis=(0, 1, 2, 3), keepdims=True)
        var = jnp.mean((v - mean) ** 2, axis=(0, 1, 2, 3), keepdims=True)
        return (v - mean) / jnp.sqrt(var + EPS) * g + b

    out = jnp.einsum("ndhwc,co->ndhwo", x, params["w1"])
    out = jax.nn.relu(bn(out, params["g1"], params["b1"]))
    out = lax.conv_general_dilated(
        out, params["w2"], window_strides=(1, 1, 1), padding="SAME",
        dimension_numbers=("NDHWC", "DHWIO", "NDHWC"))
    out = jax.nn.relu(bn(out, params["g2"], params["b2"]))
    out = jnp.einsum("ndhwc,co->ndhwo", out, params["w3"])
    out = jax.nn.relu(bn(out, params["g3"], params["b3"]) + x)
    return jnp.transpose(out, (0, 4, 1, 2, 3))


if __name__ == "__main__":
    # batch=2, in_channels=16, out_channels=4 (expansion 4 -> 16 == in_channels),
    # D=4, H=W=16, stride=1, downsample=None.
    N, Cin, D, H, W = 2, 16, 4, 16, 16
    Cmid = 4
    Cexp = Cmid * 4  # == Cin, so the identity add is shape-compatible

    key = jax.random.PRNGKey(0)
    ks = jax.random.split(key, 10)
    params = {
        "w1": 0.1 * jax.random.normal(ks[0], (Cin, Cmid), jnp.float32),
        "w2": 0.1 * jax.random.normal(ks[1], (3, 3, 3, Cmid, Cmid), jnp.float32),
        "w3": 0.1 * jax.random.normal(ks[2], (Cmid, Cexp), jnp.float32),
        "g1": 1.0 + 0.1 * jax.random.normal(ks[3], (Cmid,), jnp.float32),
        "b1": 0.1 * jax.random.normal(ks[4], (Cmid,), jnp.float32),
        "g2": 1.0 + 0.1 * jax.random.normal(ks[5], (Cmid,), jnp.float32),
        "b2": 0.1 * jax.random.normal(ks[6], (Cmid,), jnp.float32),
        "g3": 1.0 + 0.1 * jax.random.normal(ks[7], (Cexp,), jnp.float32),
        "b3": 0.1 * jax.random.normal(ks[8], (Cexp,), jnp.float32),
    }
    x = jax.random.normal(ks[9], (N, Cin, D, H, W), jnp.float32)

    y = jax.block_until_ready(bottleneck3d_forward(x, params))
    y_ref = jax.block_until_ready(bottleneck3d_reference(x, params))

    assert y.shape == (N, Cexp, D, H, W), y.shape
    max_err = float(jnp.max(jnp.abs(y - y_ref)))
    # bf16 inter-stage activation storage bounds the abs error to a few 1e-3 of
    # the O(1-5) output magnitude; 5e-2 leaves comfortable margin.
    assert max_err < 5e-2, f"mismatch vs reference: {max_err}"
    print("KERNEL_OK")
</pallas_src>

<mosaic_0001>
module attributes {stable_mosaic.version = 11 : i64} {
  func.func @_mm_bn_stats_kernel(%arg0: i32, %arg1: memref<64x512xbf16, #tpu.memory_space<vmem>>, %arg2: memref<1x512xf32, #tpu.memory_space<vmem>>, %arg3: memref<1x512xf32, #tpu.memory_space<vmem>>, %arg4: memref<512x128xf32, #tpu.memory_space<vmem>>, %arg5: memref<64x128xbf16, #tpu.memory_space<vmem>>, %arg6: memref<1x128xf32, #tpu.memory_space<vmem>>, %arg7: memref<1x128xf32, #tpu.memory_space<vmem>>) attributes {dimension_semantics = [#tpu.dimension_semantics<arbitrary>], iteration_bounds = array<i64: 1>, scalar_prefetch = 0 : i64, scratch_operands = 0 : i64, tpu.core_type = #tpu.core_type<tc>, window_params = [{transform_indices = @transform_0, window_bounds = array<i64: 64, 512>}, {pipeline_mode = #tpu.pipeline_mode<synchronous>, transform_indices = @transform_1, window_bounds = array<i64: 1, 512>}, {pipeline_mode = #tpu.pipeline_mode<synchronous>, transform_indices = @transform_2, window_bounds = array<i64: 1, 512>}, {pipeline_mode = #tpu.pipeline_mode<synchronous>, transform_indices = @transform_3, window_bounds = array<i64: 512, 128>}, {transform_indices = @transform_4, window_bounds = array<i64: 64, 128>}, {pipeline_mode = #tpu.pipeline_mode<synchronous>, transform_indices = @transform_5, window_bounds = array<i64: 1, 128>}, {pipeline_mode = #tpu.pipeline_mode<synchronous>, transform_indices = @transform_6, window_bounds = array<i64: 1, 128>}]} {
    %c0_i32 = arith.constant 0 : i32
    %0 = arith.cmpi eq, %arg0, %c0_i32 : i32
    %1 = arith.extui %0 : i1 to i32
    %c0_i32_0 = arith.constant 0 : i32
    %2 = arith.cmpi ne, %1, %c0_i32_0 : i32
    scf.if %2 {
      %cst_16 = arith.constant 0.000000e+00 : f32
      %20 = vector.broadcast %cst_16 : f32 to vector<1x128xf32>
      %c0_17 = arith.constant 0 : index
      %c0_18 = arith.constant 0 : index
      %21 = vector.load %arg6[%c0_17, %c0_18] : memref<1x128xf32, #tpu.memory_space<vmem>>, vector<1x128xf32>
      tpu.vector_store %arg6[%c0_17, %c0_18], %20 {strides = array<i32>} : memref<1x128xf32, #tpu.memory_space<vmem>>, vector<1x128xf32>,
      %cst_19 = arith.constant 0.000000e+00 : f32
      %22 = vector.broadcast %cst_19 : f32 to vector<1x128xf32>
      %c0_20 = arith.constant 0 : index
      %c0_21 = arith.constant 0 : index
      %23 = vector.load %arg7[%c0_20, %c0_21] : memref<1x128xf32, #tpu.memory_space<vmem>>, vector<1x128xf32>
      tpu.vector_store %arg7[%c0_20, %c0_21], %22 {strides = array<i32>} : memref<1x128xf32, #tpu.memory_space<vmem>>, vector<1x128xf32>,
    } else {
    }
    %c0 = arith.constant 0 : index
    %c0_1 = arith.constant 0 : index
    %3 = vector.load %arg1[%c0, %c0_1] : memref<64x512xbf16, #tpu.memory_space<vmem>>, vector<64x512xbf16>
    %4 = arith.extf %3 : vector<64x512xbf16> to vector<64x512xf32>
    %c0_2 = arith.constant 0 : index
    %c0_3 = arith.constant 0 : index
    %5 = vector.load %arg4[%c0_2, %c0_3] : memref<512x128xf32, #tpu.memory_space<vmem>>, vector<512x128xf32>
    %cst = arith.constant dense<0.000000e+00> : vector<64x128xf32>
    %6 = tpu.matmul %4, %5, %cst {dimension_numbers = #tpu.dot_dimension_numbers<[1], [0], [0], [1], [0, 0, 1, 1], [], []>} : vector<64x512xf32>, vector<512x128xf32>, vector<64x128xf32> -> vector<64x128xf32>
    %7 = arith.truncf %6 : vector<64x128xf32> to vector<64x128xbf16>
    %c0_4 = arith.constant 0 : index
    %c0_5 = arith.constant 0 : index
    %8 = vector.load %arg5[%c0_4, %c0_5] : memref<64x128xbf16, #tpu.memory_space<vmem>>, vector<64x128xbf16>
    tpu.vector_store %arg5[%c0_4, %c0_5], %7 {strides = array<i32>} : memref<64x128xbf16, #tpu.memory_space<vmem>>, vector<64x128xbf16>,
    %c0_6 = arith.constant 0 : index
    %c0_7 = arith.constant 0 : index
    %9 = vector.load %arg6[%c0_6, %c0_7] : memref<1x128xf32, #tpu.memory_space<vmem>>, vector<1x128xf32>
    %cst_8 = arith.constant dense<0.000000e+00> : vector<128xf32>
    %10 = vector.multi_reduction <add>, %6, %cst_8 [0] : vector<64x128xf32> to vector<128xf32>
    %11 = vector.shape_cast %10 : vector<128xf32> to vector<1x128xf32>
    %12 = arith.addf %9, %11 : vector<1x128xf32>
    %c0_9 = arith.constant 0 : index
    %c0_10 = arith.constant 0 : index
    %13 = vector.load %arg6[%c0_9, %c0_10] : memref<1x128xf32, #tpu.memory_space<vmem>>, vector<1x128xf32>
    tpu.vector_store %arg6[%c0_9, %c0_10], %12 {strides = array<i32>} : memref<1x128xf32, #tpu.memory_space<vmem>>, vector<1x128xf32>,
    %c0_11 = arith.constant 0 : index
    %c0_12 = arith.constant 0 : index
    %14 = vector.load %arg7[%c0_11, %c0_12] : memref<1x128xf32, #tpu.memory_space<vmem>>, vector<1x128xf32>
    %15 = arith.mulf %6, %6 : vector<64x128xf32>
    %cst_13 = arith.constant dense<0.000000e+00> : vector<128xf32>
    %16 = vector.multi_reduction <add>, %15, %cst_13 [0] : vector<64x128xf32> to vector<128xf32>
    %17 = vector.shape_cast %16 : vector<128xf32> to vector<1x128xf32>
    %18 = arith.addf %14, %17 : vector<1x128xf32>
    %c0_14 = arith.constant 0 : index
    %c0_15 = arith.constant 0 : index
    %19 = vector.load %arg7[%c0_14, %c0_15] : memref<1x128xf32, #tpu.memory_space<vmem>>, vector<1x128xf32>
    tpu.vector_store %arg7[%c0_14, %c0_15], %18 {strides = array<i32>} : memref<1x128xf32, #tpu.memory_space<vmem>>, vector<1x128xf32>,
    return
  }
  func.func @transform_0(%arg0: i32) -> (i32, i32) {
    %c0_i32 = arith.constant 0 : i32
    %c0_i32_0 = arith.constant 0 : i32
    return %arg0, %c0_i32 : i32, i32
  }
  func.func @transform_1(%arg0: i32) -> (i32, i32) {
    %c0_i32 = arith.constant 0 : i32
    %c0_i32_0 = arith.constant 0 : i32
    %c0_i32_1 = arith.constant 0 : i32
    return %c0_i32, %c0_i32_0 : i32, i32
  }
  func.func @transform_2(%arg0: i32) -> (i32, i32) {
    %c0_i32 = arith.constant 0 : i32
    %c0_i32_0 = arith.constant 0 : i32
    %c0_i32_1 = arith.constant 0 : i32
    return %c0_i32, %c0_i32_0 : i32, i32
  }
  func.func @transform_3(%arg0: i32) -> (i32, i32) {
    %c0_i32 = arith.constant 0 : i32
    %c0_i32_0 = arith.constant 0 : i32
    %c0_i32_1 = arith.constant 0 : i32
    return %c0_i32, %c0_i32_0 : i32, i32
  }
  func.func @transform_4(%arg0: i32) -> (i32, i32) {
    %c0_i32 = arith.constant 0 : i32
    %c0_i32_0 = arith.constant 0 : i32
    return %arg0, %c0_i32 : i32, i32
  }
  func.func @transform_5(%arg0: i32) -> (i32, i32) {
    %c0_i32 = arith.constant 0 : i32
    %c0_i32_0 = arith.constant 0 : i32
    %c0_i32_1 = arith.constant 0 : i32
    return %c0_i32, %c0_i32_0 : i32, i32
  }
  func.func @transform_6(%arg0: i32) -> (i32, i32) {
    %c0_i32 = arith.constant 0 : i32
    %c0_i32_0 = arith.constant 0 : i32
    %c0_i32_1 = arith.constant 0 : i32
    return %c0_i32, %c0_i32_0 : i32, i32
  }
}

</mosaic_0001>

<llo_original>
// kernel: tpu_custom_call.1
$region0: #{tpu_custom_call.1}
  #allocation0 [shape = 'u32[]', space=smem, size = 0x4, offset = 0x4, fixed_abs, tag = 'smem constant byte address 0x4 - core index']
  #allocation1 [shape = 'u32[72,128]{1,0:T(1,128)}', space=vmem, size = 0x9000, scoped, tag = 'internal scratch']
  %s0 = inlined_call_operand.hbm [shape: bf16[64,512], index: 0, kind: input, shape index: {}]
  %s1 = inlined_call_operand.hbm [shape: f32[1,512], index: 1, kind: input, shape index: {}]
  %s2 = inlined_call_operand.hbm [shape: f32[1,512], index: 2, kind: input, shape index: {}]
  %s3 = inlined_call_operand.hbm [shape: f32[512,128], index: 3, kind: input, shape index: {}]
  %s4 = inlined_call_operand.hbm [shape: bf16[64,128], index: 4, kind: output, shape index: {0}]
  %s5 = inlined_call_operand.hbm [shape: f32[1,128], index: 5, kind: output, shape index: {1}]
  %s6 = inlined_call_operand.hbm [shape: f32[1,128], index: 6, kind: output, shape index: {2}]
  %7 = xla_tuple %s4, %s5, %s6
  %s8 = sld [smem:[#allocation0]]
  $region62: #{tpu_custom_call.1} parent=0
    _
  %s10 = ssub.s32 1, %s8
  %s11 = scalar_select 0, %s10, %s8
  $region1: #{tpu_custom_call.1} parent=0
    #allocation2 [shape = 'u8[65536]{0}', space=vmem, size = 0x10000, scoped, tag = 'input window, operand 0, single buffered']
    #allocation3 [shape = 's32[1]{0}', space=sflag, size = 0x4, scoped, tag = 'scoped memory for tpu_custom_call.1']
    #allocation4 [shape = 's32[1]{0}', space=sflag, size = 0x4, scoped, tag = 'scoped memory for tpu_custom_call.1']
    #allocation5 [shape = 'u8[2048]{0}', space=vmem, size = 0x800, scoped, tag = 'input window, operand 1, single buffered']
    #allocation6 [shape = 's32[1]{0}', space=sflag, size = 0x4, scoped, tag = 'scoped memory for tpu_custom_call.1']
    #allocation7 [shape = 'u8[2048]{0}', space=vmem, size = 0x800, scoped, tag = 'input window, operand 2, single buffered']
    #allocation8 [shape = 'u8[262144]{0}', space=vmem, size = 0x40000, scoped, tag = 'input window, operand 3, single buffered']
    #allocation9 [shape = 's32[1]{0}', space=sflag, size = 0x4, scoped, tag = 'scoped memory for tpu_custom_call.1']
    #allocation10 [shape = 'u8[16384]{0}', space=vmem, size = 0x4000, scoped, tag = 'output window, operand 0, single buffered']
    #allocation11 [shape = 'u8[512]{0}', space=vmem, size = 0x400, scoped, tag = 'output window, operand 1, single buffered']
    #allocation12 [shape = 's32[1]{0}', space=sflag, size = 0x4, scoped, tag = 'scoped memory for tpu_custom_call.1']
    #allocation13 [shape = 'u8[512]{0}', space=vmem, size = 0x400, scoped, tag = 'output window, operand 2, single buffered']
    %12 = vsyncpa [#allocation3], 0
    %13 = vsyncpa [#allocation6], 0
    %14 = vsyncpa [#allocation9], 0
    %15 = vsyncpa [#allocation4], 0
    %16 = vsyncpa [#allocation12], 0
    // Predicated region
    $region2: #{tpu_custom_call.1} parent=1 // pred_check
      _
    $region3: #{tpu_custom_call.1} parent=1 // pred_check_branch
      %18 = sbr.rel (0) target = $region5
    $region4: #{tpu_custom_call.1} parent=1 // pred_region
      %20 = vsyncadd [#allocation3], 0
      %s21 = sshll.u32 %s0, 4
      %s22 = int_to_ptr.hbm [resolvable:$true] %s21
      %s23 = sshll.u32 [#allocation2], 4
      %s24 = int_to_ptr.vmem [resolvable:$true] %s23
      %29 = dma.hbm_to_vmem [thread:$0]  %s22, 2048, %s24, [#allocation3], 256, 256, 16
    $region5: #{tpu_custom_call.1} parent=1 // pred_fallthru
      _
    // Predicated region
    $region6: #{tpu_custom_call.1} parent=1 // pred_check
      _
    $region7: #{tpu_custom_call.1} parent=1 // pred_check_branch
      %31 = sbr.rel (0) target = $region9
    $region8: #{tpu_custom_call.1} parent=1 // pred_region
      %33 = vsyncadd [#allocation6], 0
      %s35 = sshll.u32 %s1, 4
      %s36 = int_to_ptr.hbm [resolvable:$true] %s35
      %s37 = sshll.u32 [#allocation5], 4
      %s38 = int_to_ptr.vmem [resolvable:$true] %s37
      %40 = dma.hbm_to_vmem [thread:$0]  %s36, 64, %s38, [#allocation6]
    $region9: #{tpu_custom_call.1} parent=1 // pred_fallthru
      _
    // Predicated region
    $region10: #{tpu_custom_call.1} parent=1 // pred_check
      _
    $region11: #{tpu_custom_call.1} parent=1 // pred_check_branch
      %42 = sbr.rel (0) target = $region13
    $region12: #{tpu_custom_call.1} parent=1 // pred_region
      %44 = vsyncadd [#allocation6], 0
      %s46 = sshll.u32 %s2, 4
      %s47 = int_to_ptr.hbm [resolvable:$true] %s46
      %s48 = sshll.u32 [#allocation7], 4
      %s49 = int_to_ptr.vmem [resolvable:$true] %s48
      %51 = dma.hbm_to_vmem [thread:$0]  %s47, 64, %s49, [#allocation6]
    $region13: #{tpu_custom_call.1} parent=1 // pred_fallthru
      _
    // Predicated region
    $region14: #{tpu_custom_call.1} parent=1 // pred_check
      _
    $region15: #{tpu_custom_call.1} parent=1 // pred_check_branch
      %53 = sbr.rel (0) target = $region17
    $region16: #{tpu_custom_call.1} parent=1 // pred_region
      %55 = vsyncadd [#allocation9], 0
      %s56 = sshll.u32 %s3, 4
      %s57 = int_to_ptr.hbm [resolvable:$true] %s56
      %s58 = sshll.u32 [#allocation8], 4
      %s59 = int_to_ptr.vmem [resolvable:$true] %s58
      %64 = dma.hbm_to_vmem [thread:$0]  %s57, 8192, %s59, [#allocation9], 128, 128, 8
    $region17: #{tpu_custom_call.1} parent=1 // pred_fallthru
      _
    // Predicated region
    $region18: #{tpu_custom_call.1} parent=1 // pred_check
      _
    $region19: #{tpu_custom_call.1} parent=1 // pred_check_branch
      %66 = sbr.rel (0) target = $region21
    $region20: #{tpu_custom_call.1} parent=1 // pred_region
      %68 = dma.done [#allocation3], 2048
    $region21: #{tpu_custom_call.1} parent=1 // pred_fallthru
      _
    // Predicated region
    $region22: #{tpu_custom_call.1} parent=1 // pred_check
      _
    $region23: #{tpu_custom_call.1} parent=1 // pred_check_branch
      %70 = sbr.rel (0) target = $region25
    $region24: #{tpu_custom_call.1} parent=1 // pred_region
      %72 = dma.done [#allocation6], 64
    $region25: #{tpu_custom_call.1} parent=1 // pred_fallthru
      _
    // Predicated region
    $region26: #{tpu_custom_call.1} parent=1 // pred_check
      _
    $region27: #{tpu_custom_call.1} parent=1 // pred_check_branch
      %74 = sbr.rel (0) target = $region29
    $region28: #{tpu_custom_call.1} parent=1 // pred_region
      %76 = dma.done [#allocation6], 64
    $region29: #{tpu_custom_call.1} parent=1 // pred_fallthru
      _
    // Predicated region
    $region30: #{tpu_custom_call.1} parent=1 // pred_check
      _
    $region31: #{tpu_custom_call.1} parent=1 // pred_check_branch
      %78 = sbr.rel (0) target = $region33
    $region32: #{tpu_custom_call.1} parent=1 // pred_region
      %80 = dma.done [#allocation9], 8192
    $region33: #{tpu_custom_call.1} parent=1 // pred_fallthru
      _
    %p81 = scmp.eq.s32.totalorder 0, 0
    // Predicated region
    $region34: #{tpu_custom_call.1} parent=1 // pred_check
      %p82 = pneg %p81
    $region35: #{tpu_custom_call.1} parent=1 // pred_check_branch
      %84 = sbr.rel (%p82) target = $region37
    $region36: #{tpu_custom_call.1} parent=1 // pred_region
      %85 = vst [vmem:[#allocation11] sm:$0x1] 0.0
      %86 = vst [vmem:[#allocation13] sm:$0x1] 0.0
    $region37: #{tpu_custom_call.1} parent=1 // pred_fallthru
      _
    %v87 = vld [vmem:[#allocation2] sm:$0xff]
    %v88 = vld [vmem:[#allocation2 + $0x8] sm:$0xff]
    %v89 = vld [vmem:[#allocation2 + $0x10] sm:$0xff]
    %v90 = vld [vmem:[#allocation2 + $0x18] sm:$0xff]
    %v91 = vld [vmem:[#allocation2 + $0x20] sm:$0xff]
    %v92 = vld [vmem:[#allocation2 + $0x28] sm:$0xff]
    %v93 = vld [vmem:[#allocation2 + $0x30] sm:$0xff]
    %v94 = vld [vmem:[#allocation2 + $0x38] sm:$0xff]
    %v95 = vld [vmem:[#allocation2 + $0x40] sm:$0xff]
    %v96 = vld [vmem:[#allocation2 + $0x48] sm:$0xff]
    %v97 = vld [vmem:[#allocation2 + $0x50] sm:$0xff]
    %v98 = vld [vmem:[#allocation2 + $0x58] sm:$0xff]
    %v99 = vld [vmem:[#allocation2 + $0x60] sm:$0xff]
    %v100 = vld [vmem:[#allocation2 + $0x68] sm:$0xff]
    %v101 = vld [vmem:[#allocation2 + $0x70] sm:$0xff]
    %v102 = vld [vmem:[#allocation2 + $0x78] sm:$0xff]
    %v103 = vunpack.c.l.bf16 %v87
    %v104 = vunpack.c.h.bf16 %v87
    %v105 = vunpack.c.l.bf16 %v88
    %v106 = vunpack.c.h.bf16 %v88
    %v107 = vunpack.c.l.bf16 %v89
    %v108 = vunpack.c.h.bf16 %v89
    %v109 = vunpack.c.l.bf16 %v90
    %v110 = vunpack.c.h.bf16 %v90
    %v111 = vunpack.c.l.bf16 %v91
    %v112 = vunpack.c.h.bf16 %v91
    %v113 = vunpack.c.l.bf16 %v92
    %v114 = vunpack.c.h.bf16 %v92
    %v115 = vunpack.c.l.bf16 %v93
    %v116 = vunpack.c.h.bf16 %v93
    %v117 = vunpack.c.l.bf16 %v94
    %v118 = vunpack.c.h.bf16 %v94
    %v119 = vunpack.c.l.bf16 %v95
    %v120 = vunpack.c.h.bf16 %v95
    %v121 = vunpack.c.l.bf16 %v96
    %v122 = vunpack.c.h.bf16 %v96
    %v123 = vunpack.c.l.bf16 %v97
    %v124 = vunpack.c.h.bf16 %v97
    %v125 = vunpack.c.l.bf16 %v98
    %v126 = vunpack.c.h.bf16 %v98
    %v127 = vunpack.c.l.bf16 %v99
    %v128 = vunpack.c.h.bf16 %v99
    %v129 = vunpack.c.l.bf16 %v100
    %v130 = vunpack.c.h.bf16 %v100
    %v131 = vunpack.c.l.bf16 %v101
    %v132 = vunpack.c.h.bf16 %v101
    %v133 = vunpack.c.l.bf16 %v102
    %v134 = vunpack.c.h.bf16 %v102
    %v135 = vld [vmem:[#allocation8] sm:$0xff]
    %v136 = vld [vmem:[#allocation8 + $0x8] sm:$0xff]
    %v137 = vld [vmem:[#allocation8 + $0x10] sm:$0xff]
    %v138 = vld [vmem:[#allocation8 + $0x18] sm:$0xff]
    %v139 = vld [vmem:[#allocation8 + $0x20] sm:$0xff]
    %v140 = vld [vmem:[#allocation8 + $0x28] sm:$0xff]
    %v141 = vld [vmem:[#allocation8 + $0x30] sm:$0xff]
    %v142 = vld [vmem:[#allocation8 + $0x38] sm:$0xff]
    %v143 = vld [vmem:[#allocation8 + $0x40] sm:$0xff]
    %v144 = vld [vmem:[#allocation8 + $0x48] sm:$0xff]
    %v145 = vld [vmem:[#allocation8 + $0x50] sm:$0xff]
    %v146 = vld [vmem:[#allocation8 + $0x58] sm:$0xff]
    %v147 = vld [vmem:[#allocation8 + $0x60] sm:$0xff]
    %v148 = vld [vmem:[#allocation8 + $0x68] sm:$0xff]
    %v149 = vld [vmem:[#allocation8 + $0x70] sm:$0xff]
    %v150 = vld [vmem:[#allocation8 + $0x78] sm:$0xff]
    %v151 = vld [vmem:[#allocation8 + $0x80] sm:$0xff]
    %v152 = vld [vmem:[#allocation8 + $0x88] sm:$0xff]
    %v153 = vld [vmem:[#allocation8 + $0x90] sm:$0xff]
    %v154 = vld [vmem:[#allocation8 + $0x98] sm:$0xff]
    %v155 = vld [vmem:[#allocation8 + $0xa0] sm:$0xff]
    %v156 = vld [vmem:[#allocation8 + $0xa8] sm:$0xff]
    %v157 = vld [vmem:[#allocation8 + $0xb0] sm:$0xff]
    %v158 = vld [vmem:[#allocation8 + $0xb8] sm:$0xff]
    %v159 = vld [vmem:[#allocation8 + $0xc0] sm:$0xff]
    %v160 = vld [vmem:[#allocation8 + $0xc8] sm:$0xff]
    %v161 = vld [vmem:[#allocation8 + $0xd0] sm:$0xff]
    %v162 = vld [vmem:[#allocation8 + $0xd8] sm:$0xff]
    %v163 = vld [vmem:[#allocation8 + $0xe0] sm:$0xff]
    %v164 = vld [vmem:[#allocation8 + $0xe8] sm:$0xff]
    %v165 = vld [vmem:[#allocation8 + $0xf0] sm:$0xff]
    %v166 = vld [vmem:[#allocation8 + $0xf8] sm:$0xff]
    %v167 = vld [vmem:[#allocation8 + $0x100] sm:$0xff]
    %v168 = vld [vmem:[#allocation8 + $0x108] sm:$0xff]
    %v169 = vld [vmem:[#allocation8 + $0x110] sm:$0xff]
    %v170 = vld [vmem:[#allocation8 + $0x118] sm:$0xff]
    %v171 = vld [vmem:[#allocation8 + $0x120] sm:$0xff]
    %v172 = vld [vmem:[#allocation8 + $0x128] sm:$0xff]
    %v173 = vld [vmem:[#allocation8 + $0x130] sm:$0xff]
    %v174 = vld [vmem:[#allocation8 + $0x138] sm:$0xff]
    %v175 = vld [vmem:[#allocation8 + $0x140] sm:$0xff]
    %v176 = vld [vmem:[#allocation8 + $0x148] sm:$0xff]
    %v177 = vld [vmem:[#allocation8 + $0x150] sm:$0xff]
    %v178 = vld [vmem:[#allocation8 + $0x158] sm:$0xff]
    %v179 = vld [vmem:[#allocation8 + $0x160] sm:$0xff]
    %v180 = vld [vmem:[#allocation8 + $0x168] sm:$0xff]
    %v181 = vld [vmem:[#allocation8 + $0x170] sm:$0xff]
    %v182 = vld [vmem:[#allocation8 + $0x178] sm:$0xff]
    %v183 = vld [vmem:[#allocation8 + $0x180] sm:$0xff]
    %v184 = vld [vmem:[#allocation8 + $0x188] sm:$0xff]
    %v185 = vld [vmem:[#allocation8 + $0x190] sm:$0xff]
    %v186 = vld [vmem:[#allocation8 + $0x198] sm:$0xff]
    %v187 = vld [vmem:[#allocation8 + $0x1a0] sm:$0xff]
    %v188 = vld [vmem:[#allocation8 + $0x1a8] sm:$0xff]
    %v189 = vld [vmem:[#allocation8 + $0x1b0] sm:$0xff]
    %v190 = vld [vmem:[#allocation8 + $0x1b8] sm:$0xff]
    %v191 = vld [vmem:[#allocation8 + $0x1c0] sm:$0xff]
    %v192 = vld [vmem:[#allocation8 + $0x1c8] sm:$0xff]
    %v193 = vld [vmem:[#allocation8 + $0x1d0] sm:$0xff]
    %v194 = vld [vmem:[#allocation8 + $0x1d8] sm:$0xff]
    %v195 = vld [vmem:[#allocation8 + $0x1e0] sm:$0xff]
    %v196 = vld [vmem:[#allocation8 + $0x1e8] sm:$0xff]
    %v197 = vld [vmem:[#allocation8 + $0x1f0] sm:$0xff]
    %v198 = vld [vmem:[#allocation8 + $0x1f8] sm:$0xff]
    %199 = vmatpush.msra.mxu0 %v150
    %200 = vmatpush.msra.mxu0 %v149
    %201 = vmatpush.msra.mxu0 %v148
    %202 = vmatpush.msra.mxu0 %v147
    %203 = vmatpush.msra.mxu0 %v146
    %204 = vmatpush.msra.mxu0 %v145
    %205 = vmatpush.msra.mxu0 %v144
    %206 = vmatpush.msra.mxu0 %v143
    %207 = vmatpush.msra.mxu0 %v142
    %208 = vmatpush.msra.mxu0 %v141
    %209 = vmatpush.msra.mxu0 %v140
    %210 = vmatpush.msra.mxu0 %v139
    %211 = vmatpush.msra.mxu0 %v138
    %212 = vmatpush.msra.mxu0 %v137
    %213 = vmatpush.msra.mxu0 %v136
    %214 = vmatpush.msra.mxu0 %v135
    %215 = vmatmul.f32.gmra.mxu0 %v103
    %v216 = vpop.f32.mrf.mxu0
    %v217 = vadd.f32 0.0, %v216
    %218 = vmatmul.f32.gmra.mxu0 %v107
    %v219 = vpop.f32.mrf.mxu0
    %v220 = vadd.f32 0.0, %v219
    %221 = vmatmul.f32.gmra.mxu0 %v111
    %v222 = vpop.f32.mrf.mxu0
    %v223 = vadd.f32 0.0, %v222
    %224 = vmatmul.f32.gmra.mxu0 %v115
    %v225 = vpop.f32.mrf.mxu0
    %v226 = vadd.f32 0.0, %v225
    %227 = vmatmul.f32.gmra.mxu0 %v119
    %v228 = vpop.f32.mrf.mxu0
    %v229 = vadd.f32 0.0, %v228
    %230 = vmatmul.f32.gmra.mxu0 %v123
    %v231 = vpop.f32.mrf.mxu0
    %v232 = vadd.f32 0.0, %v231
    %233 = vmatmul.f32.gmra.mxu0 %v127
    %v234 = vpop.f32.mrf.mxu0
    %v235 = vadd.f32 0.0, %v234
    %236 = vmatmul.f32.gmra.mxu0 %v131
    %v237 = vpop.f32.mrf.mxu0
    %v238 = vadd.f32 0.0, %v237
    %239 = vdwg.mxu0
    %240 = vmatpush.msra.mxu0 %v166
    %241 = vmatpush.msra.mxu0 %v165
    %242 = vmatpush.msra.mxu0 %v164
    %243 = vmatpush.msra.mxu0 %v163
    %244 = vmatpush.msra.mxu0 %v162
    %245 = vmatpush.msra.mxu0 %v161
    %246 = vmatpush.msra.mxu0 %v160
    %247 = vmatpush.msra.mxu0 %v159
    %248 = vmatpush.msra.mxu0 %v158
    %249 = vmatpush.msra.mxu0 %v157
    %250 = vmatpush.msra.mxu0 %v156
    %251 = vmatpush.msra.mxu0 %v155
    %252 = vmatpush.msra.mxu0 %v154
    %253 = vmatpush.msra.mxu0 %v153
    %254 = vmatpush.msra.mxu0 %v152
    %255 = vmatpush.msra.mxu0 %v151
    %256 = vmatmul.f32.gmra.mxu0 %v104
    %v257 = vpop.f32.mrf.mxu0
    %v258 = vadd.f32 %v217, %v257
    %259 = vmatmul.f32.gmra.mxu0 %v108
    %v260 = vpop.f32.mrf.mxu0
    %v261 = vadd.f32 %v220, %v260
    %262 = vmatmul.f32.gmra.mxu0 %v112
    %v263 = vpop.f32.mrf.mxu0
    %v264 = vadd.f32 %v223, %v263
    %265 = vmatmul.f32.gmra.mxu0 %v116
    %v266 = vpop.f32.mrf.mxu0
    %v267 = vadd.f32 %v226, %v266
    %268 = vmatmul.f32.gmra.mxu0 %v120
    %v269 = vpop.f32.mrf.mxu0
    %v270 = vadd.f32 %v229, %v269
    %271 = vmatmul.f32.gmra.mxu0 %v124
    %v272 = vpop.f32.mrf.mxu0
    %v273 = vadd.f32 %v232, %v272
    %274 = vmatmul.f32.gmra.mxu0 %v128
    %v275 = vpop.f32.mrf.mxu0
    %v276 = vadd.f32 %v235, %v275
    %277 = vmatmul.f32.gmra.mxu0 %v132
    %v278 = vpop.f32.mrf.mxu0
    %v279 = vadd.f32 %v238, %v278
    %280 = vdwg.mxu0
    %281 = vmatpush.msra.mxu0 %v182
    %282 = vmatpush.msra.mxu0 %v181
    %283 = vmatpush.msra.mxu0 %v180
    %284 = vmatpush.msra.mxu0 %v179
    %285 = vmatpush.msra.mxu0 %v178
    %286 = vmatpush.msra.mxu0 %v177
    %287 = vmatpush.msra.mxu0 %v176
    %288 = vmatpush.msra.mxu0 %v175
    %289 = vmatpush.msra.mxu0 %v174
    %290 = vmatpush.msra.mxu0 %v173
    %291 = vmatpush.msra.mxu0 %v172
    %292 = vmatpush.msra.mxu0 %v171
    %293 = vmatpush.msra.mxu0 %v170
    %294 = vmatpush.msra.mxu0 %v169
    %295 = vmatpush.msra.mxu0 %v168
    %296 = vmatpush.msra.mxu0 %v167
    %297 = vmatmul.f32.gmra.mxu0 %v105
    %v298 = vpop.f32.mrf.mxu0
    %v299 = vadd.f32 %v258, %v298
    %300 = vmatmul.f32.gmra.mxu0 %v109
    %v301 = vpop.f32.mrf.mxu0
    %v302 = vadd.f32 %v261, %v301
    %303 = vmatmul.f32.gmra.mxu0 %v113
    %v304 = vpop.f32.mrf.mxu0
    %v305 = vadd.f32 %v264, %v304
    %306 = vmatmul.f32.gmra.mxu0 %v117
    %v307 = vpop.f32.mrf.mxu0
    %v308 = vadd.f32 %v267, %v307
    %309 = vmatmul.f32.gmra.mxu0 %v121
    %v310 = vpop.f32.mrf.mxu0
    %v311 = vadd.f32 %v270, %v310
    %312 = vmatmul.f32.gmra.mxu0 %v125
    %v313 = vpop.f32.mrf.mxu0
    %v314 = vadd.f32 %v273, %v313
    %315 = vmatmul.f32.gmra.mxu0 %v129
    %v316 = vpop.f32.mrf.mxu0
    %v317 = vadd.f32 %v276, %v316
    %318 = vmatmul.f32.gmra.mxu0 %v133
    %v319 = vpop.f32.mrf.mxu0
    %v320 = vadd.f32 %v279, %v319
    %321 = vdwg.mxu0
    %322 = vmatpush.msra.mxu0 %v198
    %323 = vmatpush.msra.mxu0 %v197
    %324 = vmatpush.msra.mxu0 %v196
    %325 = vmatpush.msra.mxu0 %v195
    %326 = vmatpush.msra.mxu0 %v194
    %327 = vmatpush.msra.mxu0 %v193
    %328 = vmatpush.msra.mxu0 %v192
    %329 = vmatpush.msra.mxu0 %v191
    %330 = vmatpush.msra.mxu0 %v190
    %331 = vmatpush.msra.mxu0 %v189
    %332 = vmatpush.msra.mxu0 %v188
    %333 = vmatpush.msra.mxu0 %v187
    %334 = vmatpush.msra.mxu0 %v186
    %335 = vmatpush.msra.mxu0 %v185
    %336 = vmatpush.msra.mxu0 %v184
    %337 = vmatpush.msra.mxu0 %v183
    %338 = vmatmul.f32.gmra.mxu0 %v106
    %v339 = vpop.f32.mrf.mxu0
    %v340 = vadd.f32 %v299, %v339
    %341 = vmatmul.f32.gmra.mxu0 %v110
    %v342 = vpop.f32.mrf.mxu0
    %v343 = vadd.f32 %v302, %v342
    %344 = vmatmul.f32.gmra.mxu0 %v114
    %v345 = vpop.f32.mrf.mxu0
    %v346 = vadd.f32 %v305, %v345
    %347 = vmatmul.f32.gmra.mxu0 %v118
    %v348 = vpop.f32.mrf.mxu0
    %v349 = vadd.f32 %v308, %v348
    %350 = vmatmul.f32.gmra.mxu0 %v122
    %v351 = vpop.f32.mrf.mxu0
    %v352 = vadd.f32 %v311, %v351
    %353 = vmatmul.f32.gmra.mxu0 %v126
    %v354 = vpop.f32.mrf.mxu0
    %v355 = vadd.f32 %v314, %v354
    %356 = vmatmul.f32.gmra.mxu0 %v130
    %v357 = vpop.f32.mrf.mxu0
    %v358 = vadd.f32 %v317, %v357
    %359 = vmatmul.f32.gmra.mxu0 %v134
    %v360 = vpop.f32.mrf.mxu0
    %v361 = vadd.f32 %v320, %v360
    %362 = vdwg.mxu0
    %v363 = vpack.c.bf16 %v340, %v340
    %v364 = vpack.c.bf16 %v343, %v343
    %v365 = vpack.c.bf16 %v346, %v346
    %v366 = vpack.c.bf16 %v349, %v349
    %v367 = vpack.c.bf16 %v352, %v352
    %v368 = vpack.c.bf16 %v355, %v355
    %v369 = vpack.c.bf16 %v358, %v358
    %v370 = vpack.c.bf16 %v361, %v361
    %371 = vst [vmem:[#allocation10] sm:$0xf] %v363
    %372 = vst [vmem:[#allocation10 + $0x4] sm:$0xf] %v364
    %373 = vst [vmem:[#allocation10 + $0x8] sm:$0xf] %v365
    %374 = vst [vmem:[#allocation10 + $0xc] sm:$0xf] %v366
    %375 = vst [vmem:[#allocation10 + $0x10] sm:$0xf] %v367
    %376 = vst [vmem:[#allocation10 + $0x14] sm:$0xf] %v368
    %377 = vst [vmem:[#allocation10 + $0x18] sm:$0xf] %v369
    %378 = vst [vmem:[#allocation10 + $0x1c] sm:$0xf] %v370
    %v379 = vld [vmem:[#allocation11] sm:$0x1]
    %v380 = vadd.f32 %v340, %v343
    %v381 = vadd.f32 %v380, %v346
    %v382 = vadd.f32 %v381, %v349
    %v383 = vadd.f32 %v382, %v352
    %v384 = vadd.f32 %v383, %v355
    %v385 = vadd.f32 %v384, %v358
    %v386 = vadd.f32 %v385, %v361
    %v387 = vrot.slane %v386, 4
    %v388 = vadd.f32 %v386, %v387
    %v389 = vrot.slane %v388, 2
    %v390 = vadd.f32 %v388, %v389
    %v391 = vrot.slane %v390, 1
    %v392 = vadd.f32 %v390, %v391
    %v393 = vadd.f32 %v379, %v392
    %394 = vst [vmem:[#allocation11] sm:$0x1] %v393
    %v395 = vld [vmem:[#allocation13] sm:$0x1]
    %v396 = vmul.f32 %v340, %v340
    %v397 = vmul.f32 %v343, %v343
    %v398 = vmul.f32 %v346, %v346
    %v399 = vmul.f32 %v349, %v349
    %v400 = vmul.f32 %v352, %v352
    %v401 = vmul.f32 %v355, %v355
    %v402 = vmul.f32 %v358, %v358
    %v403 = vmul.f32 %v361, %v361
    %v404 = vadd.f32 %v396, %v397
    %v405 = vadd.f32 %v404, %v398
    %v406 = vadd.f32 %v405, %v399
    %v407 = vadd.f32 %v406, %v400
    %v408 = vadd.f32 %v407, %v401
    %v409 = vadd.f32 %v408, %v402
    %v410 = vadd.f32 %v409, %v403
    %v411 = vrot.slane %v410, 4
    %v412 = vadd.f32 %v410, %v411
    %v413 = vrot.slane %v412, 2
    %v414 = vadd.f32 %v412, %v413
    %v415 = vrot.slane %v414, 1
    %v416 = vadd.f32 %v414, %v415
    %v417 = vadd.f32 %v395, %v416
    %418 = vst [vmem:[#allocation13] sm:$0x1] %v417
    // Predicated region
    $region38: #{tpu_custom_call.1} parent=1 // pred_check
      _
    $region39: #{tpu_custom_call.1} parent=1 // pred_check_branch
      %420 = sbr.rel (0) target = $region41
    $region40: #{tpu_custom_call.1} parent=1 // pred_region
      %422 = vsyncadd [#allocation4], 0
      %s423 = sshll.u32 [#allocation10], 4
      %s424 = int_to_ptr.vmem [resolvable:$true] %s423
      %s425 = sshll.u32 %s4, 4
      %s426 = int_to_ptr.hbm [resolvable:$true] %s425
      %431 = dma.vmem_to_hbm [thread:$0]  %s424, 512, %s426, [#allocation4], 64, 64, 4
    $region41: #{tpu_custom_call.1} parent=1 // pred_fallthru
      _
    // Predicated region
    $region42: #{tpu_custom_call.1} parent=1 // pred_check
      _
    $region43: #{tpu_custom_call.1} parent=1 // pred_check_branch
      %433 = sbr.rel (0) target = $region45
    $region44: #{tpu_custom_call.1} parent=1 // pred_region
      %435 = vsyncadd [#allocation12], 0
      %s437 = sshll.u32 [#allocation11], 4
      %s438 = int_to_ptr.vmem [resolvable:$true] %s437
      %s439 = sshll.u32 %s5, 4
      %s440 = int_to_ptr.hbm [resolvable:$true] %s439
      %442 = dma.vmem_to_hbm [thread:$0]  %s438, 16, %s440, [#allocation12]
    $region45: #{tpu_custom_call.1} parent=1 // pred_fallthru
      _
    // Predicated region
    $region46: #{tpu_custom_call.1} parent=1 // pred_check
      _
    $region47: #{tpu_custom_call.1} parent=1 // pred_check_branch
      %444 = sbr.rel (0) target = $region49
    $region48: #{tpu_custom_call.1} parent=1 // pred_region
      %446 = vsyncadd [#allocation12], 0
      %s448 = sshll.u32 [#allocation13], 4
      %s449 = int_to_ptr.vmem [resolvable:$true] %s448
      %s450 = sshll.u32 %s6, 4
      %s451 = int_to_ptr.hbm [resolvable:$true] %s450
      %453 = dma.vmem_to_hbm [thread:$0]  %s449, 16, %s451, [#allocation12]
    $region49: #{tpu_custom_call.1} parent=1 // pred_fallthru
      _
    // Predicated region
    $region50: #{tpu_custom_call.1} parent=1 // pred_check
      _
    $region51: #{tpu_custom_call.1} parent=1 // pred_check_branch
      %455 = sbr.rel (0) target = $region53
    $region52: #{tpu_custom_call.1} parent=1 // pred_region
      %457 = dma.done [#allocation4], 512
    $region53: #{tpu_custom_call.1} parent=1 // pred_fallthru
      _
    // Predicated region
    $region54: #{tpu_custom_call.1} parent=1 // pred_check
      _
    $region55: #{tpu_custom_call.1} parent=1 // pred_check_branch
      %459 = sbr.rel (0) target = $region57
    $region56: #{tpu_custom_call.1} parent=1 // pred_region
      %461 = dma.done [#allocation12], 16
    $region57: #{tpu_custom_call.1} parent=1 // pred_fallthru
      _
    // Predicated region
    $region58: #{tpu_custom_call.1} parent=1 // pred_check
      _
    $region59: #{tpu_custom_call.1} parent=1 // pred_check_branch
      %463 = sbr.rel (0) target = $region61
    $region60: #{tpu_custom_call.1} parent=1 // pred_region
      %465 = dma.done [#allocation12], 16
    $region61: #{tpu_custom_call.1} parent=1 // pred_fallthru
      _
    %466 = vsyncpa [#allocation3], 1
    %467 = vsyncpa [#allocation6], 1
    %468 = vsyncpa [#allocation9], 1
    %469 = vsyncpa [#allocation4], 1
    %470 = vsyncpa [#allocation12], 1

</llo_original>
